<compile_context>
chip_gen: v6e
topology: v6e:2x2x1
jax: 0.10.0
libtpu: 0.0.40
codegen_flags: <defaults>
</compile_context>

<pallas_src>
import functools

import jax
import jax.numpy as jnp
from jax.experimental import pallas as pl
from jax.experimental.pallas import tpu as pltpu


def _recurrent_gcn_kernel(x_ref, wg_ref, bg_ref, wl_ref, bl_ref, out_ref, *, hidden):
    """Fused DCRNN(K=1, H0=0) cell + ReLU + Linear head, feature-major layout.

    x_ref   : (F, tile_n)     node features, transposed (lane-dense along N)
    wg_ref  : (2*Hd, F)       [Wz_x | Wh_x]^T  fused gate weight
    bg_ref  : (2*Hd, 1)       [bz   | bh  ]^T  fused gate bias (lane-broadcast)
    wl_ref  : (1, Hd)         linear head weight, row layout
    bl_ref  : (1,)  SMEM      linear head bias
    out_ref : (1, tile_n)     lane-dense output slab
    """
    x_t = x_ref[...].astype(jnp.float32)                                  # (F, tn)

    # One fused MXU pass for both gates; rows [0:Hd) -> Z-path, [Hd:2Hd) -> H_tilde.
    g = jnp.dot(wg_ref[...], x_t, preferred_element_type=jnp.float32) + bg_ref[...]

    # (1 - sigmoid(a)) == 0.5 - 0.5 * tanh(a / 2): one EUP tanh instead of exp+recip.
    one_minus_z = 0.5 - 0.5 * jnp.tanh(0.5 * g[:hidden, :])               # (Hd, tn)
    h_tilde = jnp.tanh(g[hidden:, :])                                     # (Hd, tn)
    # H0 == 0  =>  R gate and all H0 matmuls vanish; H_new = (1 - Z) * H_tilde.
    h_relu = jnp.maximum(one_minus_z * h_tilde, 0.0)                      # (Hd, tn)

    # Head stays in feature-major layout: (1, Hd) @ (Hd, tn) -> (1, tn), no transpose.
    out = jnp.dot(wl_ref[...], h_relu, preferred_element_type=jnp.float32)
    out_ref[...] = out + bl_ref[0]


def recurrent_gcn_forward(x, params, *, tile_n=None):
    """x: (N, F) float32. Returns (N, 1) float32 == linear(relu(DCRNN_K1(x, h0=0)))."""
    N, F = x.shape
    Hd = params["w_lin"].shape[0]

    if tile_n is None:
        # v5e/v6e: 128 MiB VMEM per TC -> 8192 cap. v7x: 64 MiB -> 4096 cap.
        cap = 8192
        try:
            if pltpu.get_tpu_info().vmem_capacity_bytes < (96 << 20):
                cap = 4096
        except Exception:
            pass
        tile_n = N if N <= cap else cap
        # TODO(synk): on v7x (2 TCs/chip) prefer a tile_n that makes the grid length
        # even so the "parallel" axis shards across both TensorCores.
    assert N % tile_n == 0
    assert tile_n == N or tile_n % 128 == 0

    # Host-side weight fusion / transposition (pure layout prep, no math change).
    w_gate_t = jnp.concatenate([params["wz_x"], params["wh_x"]], axis=1).T  # (2*Hd, F)
    b_gate_t = jnp.concatenate([params["bz"], params["bh"]], axis=1).T      # (2*Hd, 1)
    wl_row = params["w_lin"].T                                              # (1, Hd)
    b_lin = params["b_lin"].reshape((1,))                                   # SMEM scalar
    x_t = x.T                                                               # (F, N)

    grid = (N // tile_n,)
    grid_spec = pltpu.PrefetchScalarGridSpec(
        num_scalar_prefetch=0,
        grid=grid,
        in_specs=[
            pl.BlockSpec((F, tile_n), lambda i: (0, i)),                    # x (feat-major)
            pl.BlockSpec((2 * Hd, F), lambda i: (0, 0)),                    # fused gate W^T
            pl.BlockSpec((2 * Hd, 1), lambda i: (0, 0)),                    # fused gate b^T
            pl.BlockSpec((1, Hd), lambda i: (0, 0)),                        # head W (row)
            pl.BlockSpec(memory_space=pltpu.MemorySpace.SMEM),              # head bias
        ],
        out_specs=pl.BlockSpec((1, tile_n), lambda i: (0, i)),
    )

    cost = pl.CostEstimate(
        flops=N * (2 * F * (2 * Hd) + 6 * Hd + 2 * Hd),
        transcendentals=2 * N * Hd,
        bytes_accessed=4 * (N * F + (2 * Hd) * F + 2 * Hd + Hd + 1 + N),
    )

    out_t = pl.pallas_call(
        functools.partial(_recurrent_gcn_kernel, hidden=Hd),
        out_shape=jax.ShapeDtypeStruct((1, N), jnp.float32),
        grid_spec=grid_spec,
        compiler_params=pltpu.CompilerParams(
            dimension_semantics=("arbitrary",) if grid[0] == 1 else ("parallel",),
        ),
        cost_estimate=cost,
    )(x_t, w_gate_t, b_gate_t, wl_row, b_lin)

    # (1, N) and (N, 1) share the same row-major element order -> free relabel.
    return out_t.reshape(N, 1)


def init_params(key, node_features, hidden):
    """Deterministic synthetic weights matching DCRNN(K=1) + Linear(hidden, 1) shapes.

    DConv weight is (2, K=1, in+hid, hid); the K=1 forward only ever uses
    W[0,0] + W[1,0], so each gate weight is combined and split into x / h parts.
    The R-gate / *_h parts are kept only for the pure-JAX reference check
    (they are numerically dead in the module because H0 == 0).
    """
    F, Hd = node_features, hidden
    keys = jax.random.split(key, 8)

    def glorot(k, shape):
        fan_in, fan_out = shape[-2], shape[-1]
        lim = (6.0 / (fan_in + fan_out)) ** 0.5
        return jax.random.uniform(k, shape, jnp.float32, -lim, lim)

    wz = glorot(keys[0], (2, F + Hd, Hd)).sum(axis=0)   # W[0,0] + W[1,0]
    wr = glorot(keys[1], (2, F + Hd, Hd)).sum(axis=0)
    wh = glorot(keys[2], (2, F + Hd, Hd)).sum(axis=0)
    w_lin = glorot(keys[3], (Hd, 1))

    return {
        "wz_x": wz[:F], "wz_h": wz[F:], "bz": glorot(keys[4], (1, Hd)),
        "wr_x": wr[:F], "wr_h": wr[F:], "br": glorot(keys[5], (1, Hd)),
        "wh_x": wh[:F], "wh_h": wh[F:], "bh": glorot(keys[6], (1, Hd)),
        "w_lin": w_lin, "b_lin": glorot(keys[7], (1, 1)),
    }


def _reference_forward(x, params, N, Hd):
    """Pure-JAX reference of the FULL (un-simplified) DCRNN K=1 cell + head."""
    hp = jax.lax.Precision.HIGHEST
    h0 = jnp.zeros((N, Hd), jnp.float32)
    z = jax.nn.sigmoid(jnp.dot(x, params["wz_x"], precision=hp)
                       + jnp.dot(h0, params["wz_h"], precision=hp) + params["bz"])
    r = jax.nn.sigmoid(jnp.dot(x, params["wr_x"], precision=hp)
                       + jnp.dot(h0, params["wr_h"], precision=hp) + params["br"])
    h_t = jnp.tanh(jnp.dot(x, params["wh_x"], precision=hp)
                   + jnp.dot(h0 * r, params["wh_h"], precision=hp) + params["bh"])
    h_new = z * h0 + (1.0 - z) * h_t
    return jnp.dot(jnp.maximum(h_new, 0.0), params["w_lin"], precision=hp) + params["b_lin"]


if __name__ == "__main__":
    key = jax.random.PRNGKey(0)
    k_x, k_e, k_ew = jax.random.split(key, 3)

    N = 128          # nodes
    F = 4            # node_features
    Hd = 32          # config['hidden'][0]
    E = 256          # edges

    x = jax.random.normal(k_x, (N, F), jnp.float32)

    # Present in the module signature but numerically unused for K=1 DConv.
    # TODO(synk): if a DConv variant uses deg/edge even at K=1, add a
    # gather/scatter diffusion stage (scalar-prefetched edge offsets) here.
    edge_index = jax.random.randint(k_e, (2, E), 0, N, jnp.int32)
    edge_weight = jax.random.uniform(k_ew, (E,), jnp.float32)
    prev_hidden_state = jnp.zeros((N, Hd), jnp.float32)   # never consumed by forward

    params = init_params(jax.random.PRNGKey(1), F, Hd)

    # TODO(synk): if the model is unrolled over T snapshots, stack them into one
    # (T*N, F) input and call this wrapper once to amortize launch overhead.
    out = recurrent_gcn_forward(x, params)
    out = jax.block_until_ready(out)
    assert out.shape == (N, 1) and out.dtype == jnp.float32

    ref = _reference_forward(x, params, N, Hd)
    assert jnp.allclose(out, ref, atol=1e-2, rtol=1e-2), "mismatch vs. pure-JAX reference"

    print("KERNEL_OK")
</pallas_src>

<mosaic_0001>
module attributes {stable_mosaic.version = 11 : i64} {
  func.func @_recurrent_gcn_kernel(%arg0: i32, %arg1: memref<4x128xf32, #tpu.memory_space<vmem>>, %arg2: memref<64x4xf32, #tpu.memory_space<vmem>>, %arg3: memref<64x1xf32, #tpu.memory_space<vmem>>, %arg4: memref<1x32xf32, #tpu.memory_space<vmem>>, %arg5: memref<1xf32, #tpu.memory_space<smem>>, %arg6: memref<1x128xf32, #tpu.memory_space<vmem>>) attributes {dimension_semantics = [#tpu.dimension_semantics<arbitrary>], iteration_bounds = array<i64: 1>, scalar_prefetch = 0 : i64, scratch_operands = 0 : i64, tpu.core_type = #tpu.core_type<tc>, window_params = [{transform_indices = @transform_0, window_bounds = array<i64: 4, 128>}, {pipeline_mode = #tpu.pipeline_mode<synchronous>, transform_indices = @transform_1, window_bounds = array<i64: 64, 4>}, {pipeline_mode = #tpu.pipeline_mode<synchronous>, transform_indices = @transform_2, window_bounds = array<i64: 64, 1>}, {pipeline_mode = #tpu.pipeline_mode<synchronous>, transform_indices = @transform_3, window_bounds = array<i64: 1, 32>}, {transform_indices = @transform_4, window_bounds = array<i64: 1>}, {transform_indices = @transform_5, window_bounds = array<i64: 1, 128>}]} {
    %c0 = arith.constant 0 : index
    %c0_0 = arith.constant 0 : index
    %0 = vector.load %arg1[%c0, %c0_0] : memref<4x128xf32, #tpu.memory_space<vmem>>, vector<4x128xf32>
    %c0_1 = arith.constant 0 : index
    %c0_2 = arith.constant 0 : index
    %1 = vector.load %arg2[%c0_1, %c0_2] : memref<64x4xf32, #tpu.memory_space<vmem>>, vector<64x4xf32>
    %cst = arith.constant dense<0.000000e+00> : vector<64x128xf32>
    %2 = tpu.matmul %1, %0, %cst {dimension_numbers = #tpu.dot_dimension_numbers<[1], [0], [0], [1], [0, 0, 1, 1], [], []>} : vector<64x4xf32>, vector<4x128xf32>, vector<64x128xf32> -> vector<64x128xf32>
    %c0_3 = arith.constant 0 : index
    %c0_4 = arith.constant 0 : index
    %3 = vector.load %arg3[%c0_3, %c0_4] : memref<64x1xf32, #tpu.memory_space<vmem>>, vector<64x1xf32>
    %4 = vector.broadcast %3 : vector<64x1xf32> to vector<64x128xf32>
    %5 = arith.addf %2, %4 : vector<64x128xf32>
    %6 = vector.extract_strided_slice %5 {offsets = [0, 0], sizes = [32, 128], strides = [1, 1]} : vector<64x128xf32> to vector<32x128xf32>
    %cst_5 = arith.constant 5.000000e-01 : f32
    %7 = vector.broadcast %cst_5 : f32 to vector<32x128xf32>
    %8 = arith.mulf %7, %6 : vector<32x128xf32>
    %9 = math.tanh %8 : vector<32x128xf32>
    %cst_6 = arith.constant 5.000000e-01 : f32
    %10 = vector.broadcast %cst_6 : f32 to vector<32x128xf32>
    %11 = arith.mulf %10, %9 : vector<32x128xf32>
    %cst_7 = arith.constant 5.000000e-01 : f32
    %12 = vector.broadcast %cst_7 : f32 to vector<32x128xf32>
    %13 = arith.subf %12, %11 : vector<32x128xf32>
    %14 = vector.extract_strided_slice %5 {offsets = [32, 0], sizes = [32, 128], strides = [1, 1]} : vector<64x128xf32> to vector<32x128xf32>
    %15 = math.tanh %14 : vector<32x128xf32>
    %16 = arith.mulf %13, %15 : vector<32x128xf32>
    %cst_8 = arith.constant 0.000000e+00 : f32
    %17 = vector.broadcast %cst_8 : f32 to vector<32x128xf32>
    %18 = arith.maximumf %16, %17 : vector<32x128xf32>
    %c0_9 = arith.constant 0 : index
    %c0_10 = arith.constant 0 : index
    %19 = vector.load %arg4[%c0_9, %c0_10] : memref<1x32xf32, #tpu.memory_space<vmem>>, vector<1x32xf32>
    %cst_11 = arith.constant dense<0.000000e+00> : vector<1x128xf32>
    %20 = tpu.matmul %19, %18, %cst_11 {dimension_numbers = #tpu.dot_dimension_numbers<[1], [0], [0], [1], [0, 0, 1, 1], [], []>} : vector<1x32xf32>, vector<32x128xf32>, vector<1x128xf32> -> vector<1x128xf32>
    %c0_12 = arith.constant 0 : index
    %21 = memref.load %arg5[%c0_12] : memref<1xf32, #tpu.memory_space<smem>>
    %22 = vector.broadcast %21 : f32 to vector<1x128xf32>
    %23 = arith.addf %20, %22 : vector<1x128xf32>
    %c0_13 = arith.constant 0 : index
    %c0_14 = arith.constant 0 : index
    %24 = vector.load %arg6[%c0_13, %c0_14] : memref<1x128xf32, #tpu.memory_space<vmem>>, vector<1x128xf32>
    tpu.vector_store %arg6[%c0_13, %c0_14], %23 {strides = array<i32>} : memref<1x128xf32, #tpu.memory_space<vmem>>, vector<1x128xf32>,
    return
  }
  func.func @transform_0(%arg0: i32) -> (i32, i32) {
    %c0_i32 = arith.constant 0 : i32
    %c0_i32_0 = arith.constant 0 : i32
    return %c0_i32, %arg0 : i32, i32
  }
  func.func @transform_1(%arg0: i32) -> (i32, i32) {
    %c0_i32 = arith.constant 0 : i32
    %c0_i32_0 = arith.constant 0 : i32
    %c0_i32_1 = arith.constant 0 : i32
    return %c0_i32, %c0_i32_0 : i32, i32
  }
  func.func @transform_2(%arg0: i32) -> (i32, i32) {
    %c0_i32 = arith.constant 0 : i32
    %c0_i32_0 = arith.constant 0 : i32
    %c0_i32_1 = arith.constant 0 : i32
    return %c0_i32, %c0_i32_0 : i32, i32
  }
  func.func @transform_3(%arg0: i32) -> (i32, i32) {
    %c0_i32 = arith.constant 0 : i32
    %c0_i32_0 = arith.constant 0 : i32
    %c0_i32_1 = arith.constant 0 : i32
    return %c0_i32, %c0_i32_0 : i32, i32
  }
  func.func @transform_4(%arg0: i32) -> i32 {
    %c0_i32 = arith.constant 0 : i32
    %c0_i32_0 = arith.constant 0 : i32
    return %c0_i32 : i32
  }
  func.func @transform_5(%arg0: i32) -> (i32, i32) {
    %c0_i32 = arith.constant 0 : i32
    %c0_i32_0 = arith.constant 0 : i32
    return %c0_i32, %arg0 : i32, i32
  }
}

</mosaic_0001>

<llo_original>
// kernel: tpu_custom_call.1
$region0: #{tpu_custom_call.1}
  #allocation0 [shape = 'u32[]', space=smem, size = 0x4, offset = 0x4, fixed_abs, tag = 'smem constant byte address 0x4 - core index']
  #allocation1 [shape = 'u32[144,128]{1,0:T(1,128)}', space=vmem, size = 0x12000, scoped, tag = 'internal scratch']
  #allocation2 [shape = 'f32[1]{0:T(128)S(6)}', space=smem, size = 0x200, scoped, tag = 'scoped memory for tpu_custom_call.1']
  %s0 = inlined_call_operand.vmem [shape: f32[4,128], index: 0, kind: input, shape index: {}]
  %s1 = inlined_call_operand.vmem [shape: f32[64,4], index: 1, kind: input, shape index: {}]
  %s2 = inlined_call_operand.vmem [shape: f32[64,1], index: 2, kind: input, shape index: {}]
  %s3 = inlined_call_operand.vmem [shape: f32[1,32], index: 3, kind: input, shape index: {}]
  %s4 = inlined_call_operand.<no memory space> [shape: f32[1], index: 4, kind: input, shape index: {}]
  %s5 = inlined_call_operand.hbm [shape: f32[1,128], index: 5, kind: output, shape index: {}]
  %s6 = sld [smem:[#allocation0]]
  $region30: #{tpu_custom_call.1} parent=0
    _
  %s8 = ssub.s32 1, %s6
  %s9 = scalar_select 0, %s8, %s6
  %10 = sst [smem:[#allocation2]] %s4
  $region1: #{tpu_custom_call.1} parent=0
    #allocation3 [shape = 'u8[512]{0}', space=vmem, size = 0x400, scoped, tag = 'output window, operand 0, single buffered']
    #allocation4 [shape = 's32[1]{0}', space=sflag, size = 0x4, scoped, tag = 'scoped memory for tpu_custom_call.1']
    %11 = vsyncpa [#allocation4], 0
    // Predicated region
    $region2: #{tpu_custom_call.1} parent=1 // pred_check
      _
    $region3: #{tpu_custom_call.1} parent=1 // pred_check_branch
      %13 = sbr.rel (0) target = $region5
    $region4: #{tpu_custom_call.1} parent=1 // pred_region
      _
    $region5: #{tpu_custom_call.1} parent=1 // pred_fallthru
      _
    // Predicated region
    $region6: #{tpu_custom_call.1} parent=1 // pred_check
      _
    $region7: #{tpu_custom_call.1} parent=1 // pred_check_branch
      %15 = sbr.rel (0) target = $region9
    $region8: #{tpu_custom_call.1} parent=1 // pred_region
      _
    $region9: #{tpu_custom_call.1} parent=1 // pred_fallthru
      _
    // Predicated region
    $region10: #{tpu_custom_call.1} parent=1 // pred_check
      _
    $region11: #{tpu_custom_call.1} parent=1 // pred_check_branch
      %17 = sbr.rel (0) target = $region13
    $region12: #{tpu_custom_call.1} parent=1 // pred_region
      _
    $region13: #{tpu_custom_call.1} parent=1 // pred_fallthru
      _
    // Predicated region
    $region14: #{tpu_custom_call.1} parent=1 // pred_check
      _
    $region15: #{tpu_custom_call.1} parent=1 // pred_check_branch
      %19 = sbr.rel (0) target = $region17
    $region16: #{tpu_custom_call.1} parent=1 // pred_region
      _
    $region17: #{tpu_custom_call.1} parent=1 // pred_fallthru
      _
    // Predicated region
    $region18: #{tpu_custom_call.1} parent=1 // pred_check
      _
    $region19: #{tpu_custom_call.1} parent=1 // pred_check_branch
      %21 = sbr.rel (0) target = $region21
    $region20: #{tpu_custom_call.1} parent=1 // pred_region
      _
    $region21: #{tpu_custom_call.1} parent=1 // pred_fallthru
      _
    %v22 = vld [vmem:[%s0] sm:$0xf]
    %v23 = vld [vmem:[%s1] sm:$0xff]
    %v24 = vld [vmem:[%s1 + $0x8] sm:$0xff]
    %v25 = vld [vmem:[%s1 + $0x10] sm:$0xff]
    %v26 = vld [vmem:[%s1 + $0x18] sm:$0xff]
    %v27 = vld [vmem:[%s1 + $0x20] sm:$0xff]
    %v28 = vld [vmem:[%s1 + $0x28] sm:$0xff]
    %v29 = vld [vmem:[%s1 + $0x30] sm:$0xff]
    %v30 = vld [vmem:[%s1 + $0x38] sm:$0xff]
    %v31 = vld [vmem:[%s2] sm:$0xff]
    %v32 = vld [vmem:[%s2 + $0x8] sm:$0xff]
    %v33 = vld [vmem:[%s2 + $0x10] sm:$0xff]
    %v34 = vld [vmem:[%s2 + $0x18] sm:$0xff]
    %v35 = vld [vmem:[%s2 + $0x20] sm:$0xff]
    %v36 = vld [vmem:[%s2 + $0x28] sm:$0xff]
    %v37 = vld [vmem:[%s2 + $0x30] sm:$0xff]
    %v38 = vld [vmem:[%s2 + $0x38] sm:$0xff]
    %40 = vset.pattern.permute.xlu0 0
    %41 = vperm.xlu0 %40, %v31
    %v42 = vpop.permute.xlu0 %41
    %45 = vset.pattern.permute.xlu0 0
    %46 = vperm.xlu0 %45, %v32
    %v47 = vpop.permute.xlu0 %46
    %50 = vset.pattern.permute.xlu0 0
    %51 = vperm.xlu0 %50, %v33
    %v52 = vpop.permute.xlu0 %51
    %55 = vset.pattern.permute.xlu0 0
    %56 = vperm.xlu0 %55, %v34
    %v57 = vpop.permute.xlu0 %56
    %60 = vset.pattern.permute.xlu0 0
    %61 = vperm.xlu0 %60, %v35
    %v62 = vpop.permute.xlu0 %61
    %65 = vset.pattern.permute.xlu0 0
    %66 = vperm.xlu0 %65, %v36
    %v67 = vpop.permute.xlu0 %66
    %70 = vset.pattern.permute.xlu0 0
    %71 = vperm.xlu0 %70, %v37
    %v72 = vpop.permute.xlu0 %71
    %75 = vset.pattern.permute.xlu0 0
    %76 = vperm.xlu0 %75, %v38
    %v77 = vpop.permute.xlu0 %76
    %vm79 = vcmask 31744
    %v81 = vsel %vm79, %v23, 0
    %v84 = vsel %vm79, %v24, 0
    %v87 = vsel %vm79, %v25, 0
    %v90 = vsel %vm79, %v26, 0
    %v93 = vsel %vm79, %v27, 0
    %v96 = vsel %vm79, %v28, 0
    %v99 = vsel %vm79, %v29, 0
    %v102 = vsel %vm79, %v30, 0
    %vm104 = vcmask 1043456
    %v106 = vsel %vm104, %v22, 0
    %108 = vmatprep.subr.mxu0 0.0
    %109 = vmatpush1.msra.mxu0 0.0
    %110 = vmatprep.subr.mxu0 0.0
    %111 = vmatpush1.msra.mxu0 0.0
    %112 = vmatprep.subr.mxu0 0.0
    %113 = vmatpush1.msra.mxu0 0.0
    %114 = vmatprep.subr.mxu0 0.0
    %115 = vmatpush1.msra.mxu0 0.0
    %116 = vmatprep.subr.mxu0 0.0
    %117 = vmatpush1.msra.mxu0 0.0
    %118 = vmatprep.subr.mxu0 0.0
    %119 = vmatpush1.msra.mxu0 0.0
    %120 = vmatprep.subr.mxu0 0.0
    %121 = vmatpush1.msra.mxu0 0.0
    %122 = vmatprep.subr.mxu0 0.0
    %123 = vmatpush1.msra.mxu0 0.0
    %124 = vmatprep.subr.mxu0 0.0
    %125 = vmatpush1.msra.mxu0 0.0
    %126 = vmatprep.subr.mxu0 0.0
    %127 = vmatpush1.msra.mxu0 0.0
    %128 = vmatprep.subr.mxu0 0.0
    %129 = vmatpush1.msra.mxu0 0.0
    %130 = vmatprep.subr.mxu0 0.0
    %131 = vmatpush1.msra.mxu0 0.0
    %132 = vmatprep.subr.mxu0 0.0
    %133 = vmatpush1.msra.mxu0 0.0
    %134 = vmatprep.subr.mxu0 0.0
    %135 = vmatpush1.msra.mxu0 0.0
    %136 = vmatprep.subr.mxu0 0.0
    %137 = vmatpush1.msra.mxu0 0.0
    %138 = vmatprep.subr.mxu0 0.0
    %139 = vmatpush1.msra.mxu0 %v106
    %140 = vmatprep.subr.mxu0 0.0
    %141 = vmatpush2.msra.mxu0 0.0
    %142 = vmatprep.subr.mxu0 0.0
    %143 = vmatpush2.msra.mxu0 0.0
    %144 = vmatprep.subr.mxu0 0.0
    %145 = vmatpush2.msra.mxu0 0.0
    %146 = vmatprep.subr.mxu0 0.0
    %147 = vmatpush2.msra.mxu0 0.0
    %148 = vmatprep.subr.mxu0 0.0
    %149 = vmatpush2.msra.mxu0 0.0
    %150 = vmatprep.subr.mxu0 0.0
    %151 = vmatpush2.msra.mxu0 0.0
    %152 = vmatprep.subr.mxu0 0.0
    %153 = vmatpush2.msra.mxu0 0.0
    %154 = vmatprep.subr.mxu0 0.0
    %155 = vmatpush2.msra.mxu0 0.0
    %156 = vmatprep.subr.mxu0 0.0
    %157 = vmatpush2.msra.mxu0 0.0
    %158 = vmatprep.subr.mxu0 0.0
    %159 = vmatpush2.msra.mxu0 0.0
    %160 = vmatprep.subr.mxu0 0.0
    %161 = vmatpush2.msra.mxu0 0.0
    %162 = vmatprep.subr.mxu0 0.0
    %163 = vmatpush2.msra.mxu0 0.0
    %164 = vmatprep.subr.mxu0 0.0
    %165 = vmatpush2.msra.mxu0 0.0
    %166 = vmatprep.subr.mxu0 0.0
    %167 = vmatpush2.msra.mxu0 0.0
    %168 = vmatprep.subr.mxu0 0.0
    %169 = vmatpush2.msra.mxu0 0.0
    %170 = vmatprep.subr.mxu0 0.0
    %171 = vmatpush2.msra.mxu0 0.0
    %172 = vmatprep.mubr.f32.mxu0 0.0
    %173 = vmatmul.mubr.f32.gmra.mxu0 %v81
    %v174 = vpop.f32.mrf.mxu0
    %v175 = vadd.f32 %v42, %v174
    %v176 = vpop.f32.mrf.mxu0
    %177 = vmatprep.mubr.f32.mxu0 0.0
    %178 = vmatmul.mubr.f32.gmra.mxu0 %v84
    %v179 = vpop.f32.mrf.mxu0
    %v180 = vadd.f32 %v47, %v179
    %v181 = vpop.f32.mrf.mxu0
    %182 = vmatprep.mubr.f32.mxu0 0.0
    %183 = vmatmul.mubr.f32.gmra.mxu0 %v87
    %v184 = vpop.f32.mrf.mxu0
    %v185 = vadd.f32 %v52, %v184
    %v186 = vpop.f32.mrf.mxu0
    %187 = vmatprep.mubr.f32.mxu0 0.0
    %188 = vmatmul.mubr.f32.gmra.mxu0 %v90
    %v189 = vpop.f32.mrf.mxu0
    %v190 = vadd.f32 %v57, %v189
    %v191 = vpop.f32.mrf.mxu0
    %192 = vmatprep.mubr.f32.mxu0 0.0
    %193 = vmatmul.mubr.f32.gmra.mxu0 %v93
    %v194 = vpop.f32.mrf.mxu0
    %v195 = vadd.f32 %v62, %v194
    %v196 = vpop.f32.mrf.mxu0
    %197 = vmatprep.mubr.f32.mxu0 0.0
    %198 = vmatmul.mubr.f32.gmra.mxu0 %v96
    %v199 = vpop.f32.mrf.mxu0
    %v200 = vadd.f32 %v67, %v199
    %v201 = vpop.f32.mrf.mxu0
    %202 = vmatprep.mubr.f32.mxu0 0.0
    %203 = vmatmul.mubr.f32.gmra.mxu0 %v99
    %v204 = vpop.f32.mrf.mxu0
    %v205 = vadd.f32 %v72, %v204
    %v206 = vpop.f32.mrf.mxu0
    %207 = vmatprep.mubr.f32.mxu0 0.0
    %208 = vmatmul.mubr.f32.gmra.mxu0 %v102
    %v209 = vpop.f32.mrf.mxu0
    %v210 = vadd.f32 %v77, %v209
    %v211 = vpop.f32.mrf.mxu0
    %212 = vdwg.mxu0
    %v213 = vmul.f32 %v175, 0.5
    %v214 = vmul.f32 %v180, 0.5
    %v215 = vmul.f32 %v185, 0.5
    %v216 = vmul.f32 %v190, 0.5
    %v217 = vtanh.pop %v213
    %v218 = vtanh.pop %v214
    %v219 = vtanh.pop %v215
    %v220 = vtanh.pop %v216
    %v221 = vmul.f32 %v217, 0.5
    %v222 = vmul.f32 %v218, 0.5
    %v223 = vmul.f32 %v219, 0.5
    %v224 = vmul.f32 %v220, 0.5
    %v225 = vsub.f32 0.5, %v221
    %v226 = vsub.f32 0.5, %v222
    %v227 = vsub.f32 0.5, %v223
    %v228 = vsub.f32 0.5, %v224
    %v229 = vtanh.pop %v195
    %v230 = vtanh.pop %v200
    %v231 = vtanh.pop %v205
    %v232 = vtanh.pop %v210
    %v233 = vmul.f32 %v225, %v229
    %v234 = vmul.f32 %v226, %v230
    %v235 = vmul.f32 %v227, %v231
    %v236 = vmul.f32 %v228, %v232
    %v237 = vmax.f32 %v233, 0.0
    %v238 = vmax.f32 %v234, 0.0
    %v239 = vmax.f32 %v235, 0.0
    %v240 = vmax.f32 %v236, 0.0
    %v241 = vld [vmem:[%s3] sm:$0x1]
    %s242 = sld [smem:[#allocation2]]
    %v243 = vstv %s242
    %vm244 = vcmask 261120
    %v246 = vsel %vm244, %v241, 0
    %248 = vmatprep.subr.mxu0 0.0
    %249 = vmatpush1.msra.mxu0 0.0
    %250 = vmatprep.subr.mxu0 0.0
    %251 = vmatpush1.msra.mxu0 0.0
    %252 = vmatprep.subr.mxu0 0.0
    %253 = vmatpush1.msra.mxu0 0.0
    %254 = vmatprep.subr.mxu0 0.0
    %255 = vmatpush1.msra.mxu0 0.0
    %256 = vmatprep.subr.mxu0 0.0
    %257 = vmatpush1.msra.mxu0 0.0
    %258 = vmatprep.subr.mxu0 0.0
    %259 = vmatpush1.msra.mxu0 0.0
    %260 = vmatprep.subr.mxu0 0.0
    %261 = vmatpush1.msra.mxu0 0.0
    %262 = vmatprep.subr.mxu0 0.0
    %263 = vmatpush1.msra.mxu0 0.0
    %264 = vmatprep.subr.mxu0 0.0
    %265 = vmatpush1.msra.mxu0 0.0
    %266 = vmatprep.subr.mxu0 0.0
    %267 = vmatpush1.msra.mxu0 0.0
    %268 = vmatprep.subr.mxu0 0.0
    %269 = vmatpush1.msra.mxu0 0.0
    %270 = vmatprep.subr.mxu0 0.0
    %271 = vmatpush1.msra.mxu0 0.0
    %272 = vmatprep.subr.mxu0 0.0
    %273 = vmatpush1.msra.mxu0 %v240
    %274 = vmatprep.subr.mxu0 0.0
    %275 = vmatpush1.msra.mxu0 %v239
    %276 = vmatprep.subr.mxu0 0.0
    %277 = vmatpush1.msra.mxu0 %v238
    %278 = vmatprep.subr.mxu0 0.0
    %279 = vmatpush1.msra.mxu0 %v237
    %280 = vmatprep.subr.mxu0 0.0
    %281 = vmatpush2.msra.mxu0 0.0
    %282 = vmatprep.subr.mxu0 0.0
    %283 = vmatpush2.msra.mxu0 0.0
    %284 = vmatprep.subr.mxu0 0.0
    %285 = vmatpush2.msra.mxu0 0.0
    %286 = vmatprep.subr.mxu0 0.0
    %287 = vmatpush2.msra.mxu0 0.0
    %288 = vmatprep.subr.mxu0 0.0
    %289 = vmatpush2.msra.mxu0 0.0
    %290 = vmatprep.subr.mxu0 0.0
    %291 = vmatpush2.msra.mxu0 0.0
    %292 = vmatprep.subr.mxu0 0.0
    %293 = vmatpush2.msra.mxu0 0.0
    %294 = vmatprep.subr.mxu0 0.0
    %295 = vmatpush2.msra.mxu0 0.0
    %296 = vmatprep.subr.mxu0 0.0
    %297 = vmatpush2.msra.mxu0 0.0
    %298 = vmatprep.subr.mxu0 0.0
    %299 = vmatpush2.msra.mxu0 0.0
    %300 = vmatprep.subr.mxu0 0.0
    %301 = vmatpush2.msra.mxu0 0.0
    %302 = vmatprep.subr.mxu0 0.0
    %303 = vmatpush2.msra.mxu0 0.0
    %304 = vmatprep.subr.mxu0 0.0
    %305 = vmatpush2.msra.mxu0 0.0
    %306 = vmatprep.subr.mxu0 0.0
    %307 = vmatpush2.msra.mxu0 0.0
    %308 = vmatprep.subr.mxu0 0.0
    %309 = vmatpush2.msra.mxu0 0.0
    %310 = vmatprep.subr.mxu0 0.0
    %311 = vmatpush2.msra.mxu0 0.0
    %312 = vmatprep.mubr.f32.mxu0 0.0
    %313 = vmatmul.mubr.f32.gmra.mxu0 %v246
    %v314 = vpop.f32.mrf.mxu0
    %v315 = vadd.f32 %v243, %v314
    %v316 = vpop.f32.mrf.mxu0
    %317 = vdwg.mxu0
    %318 = vst [vmem:[#allocation3] sm:$0x1] %v315
    // Predicated region
    $region22: #{tpu_custom_call.1} parent=1 // pred_check
      _
    $region23: #{tpu_custom_call.1} parent=1 // pred_check_branch
      %320 = sbr.rel (0) target = $region25
    $region24: #{tpu_custom_call.1} parent=1 // pred_region
      %s322 = ssub.s32 16, 16
      %323 = vsyncadd [#allocation4], %s322
      %s325 = sshll.u32 [#allocation3], 4
      %s326 = int_to_ptr.vmem [resolvable:$true] %s325
      %328 = dma.vmem_to_hbm [thread:$0]  %s326, 16, %s5, [#allocation4]
    $region25: #{tpu_custom_call.1} parent=1 // pred_fallthru
      _
    // Predicated region
    $region26: #{tpu_custom_call.1} parent=1 // pred_check
      _
    $region27: #{tpu_custom_call.1} parent=1 // pred_check_branch
      %330 = sbr.rel (0) target = $region29
    $region28: #{tpu_custom_call.1} parent=1 // pred_region
      %331 = dma.done [#allocation4], 16
    $region29: #{tpu_custom_call.1} parent=1 // pred_fallthru
      _
    %332 = vsyncpa [#allocation4], 1

</llo_original>
